<compile_context>
chip_gen: v7x
topology: tpu7x:2x2x1
jax: 0.10.0
libtpu: 0.0.40
codegen_flags: <defaults>
</compile_context>

<pallas_src>
import jax
import jax.numpy as jnp
from jax.experimental import pallas as pl
from jax.experimental.pallas import tpu as pltpu


def _attention_kernel(z_ref, w_ref, out_ref, beta_ref):
    # z_ref    : (B, M, D) tile of batch rows (native dtype)
    # w_ref    : (1, D)    shared projection weight
    # out_ref  : (B, D)    fused output slab (lane-dense)
    # beta_ref : (B, M)    attention-weight slab (lane-dense)
    z = z_ref[...]                                   # (B, M, D) native dtype
    w = w_ref[...].astype(z.dtype)                   # (1, D)

    # scores[b, m] = sum_d z[b, m, d] * w[d]: native-dtype VPU multiply,
    # f32 accumulation over the lane axis.  Tiny contraction; the MXU would
    # sit idle here, and the kernel stays memory-bound either way.
    scores = jnp.sum((z * w).astype(jnp.float32), axis=-1)        # (B, M)

    # Row-wise softmax over M (dim=1 of the original (N, M, D) tensor).
    m = jnp.max(scores, axis=-1, keepdims=True)                   # (B, 1)
    e = jnp.exp(scores - m)                                       # (B, M) f32
    denom = jnp.sum(e, axis=-1, keepdims=True)                    # (B, 1)
    inv = pl.reciprocal(denom, approx=False)   # exact; free in a mem-bound kernel

    # Unnormalized weighted sum over M, scaled by 1/denom at the end so the
    # big (B, M, D) multiply does not wait on the softmax normalization.
    wsum = jnp.sum(e[:, :, None] * z, axis=1)                     # (B, D) f32

    out_ref[...] = (wsum * inv).astype(out_ref.dtype)
    beta_ref[...] = (e * inv).astype(beta_ref.dtype)


def attention_forward(z, proj_weight, *, target_tile_bytes=8 * 1024 * 1024,
                      vmem_limit_bytes=48 * 1024 * 1024):
    """z: (N, M, D); proj_weight: (1, D) == nn.Linear(in_size, 1, bias=False).weight.

    Returns (fused (N, D), beta (N, M, 1)) matching the PyTorch module.
    """
    N, M, D = z.shape
    itemsize = jnp.dtype(z.dtype).itemsize

    # Live VMEM bytes per batch row: double-buffered native z tile (2x) plus
    # roughly two f32-sized (M, D) temporaries (the z*w product feeding the
    # score reduce and the e*z product feeding the M reduce), plus the small
    # double-buffered output slabs.
    live_per_row = M * D * (2 * itemsize + 2 * 4) + 2 * (M + D) * itemsize
    budget = int(0.8 * vmem_limit_bytes)

    min_rows = N if N < 8 else 8
    if min_rows * live_per_row > budget:
        # A minimal row-block already blows the VMEM budget; this shape needs
        # an M-tiled online-softmax fallback (not implemented) -> fail loudly
        # instead of opaquely OOM-ing at compile time.
        raise ValueError(
            f"Attention row-block of {min_rows} rows needs ~"
            f"{min_rows * live_per_row} bytes of VMEM, exceeding the budget of "
            f"{budget} bytes; M-tiling would be required for this shape.")

    # Rows per tile: dtype-aware target DMA size, clamped by the VMEM budget.
    B = max(1, min(target_tile_bytes // (M * D * itemsize),
                   budget // live_per_row))
    # Keep the "parallel" batch grid populated (>= ~8 blocks) for megacore.
    if N >= 64:
        B = min(B, pl.cdiv(N, 8))
    if B >= N:
        B = N                               # single full-extent block
    else:
        B = min(max(8, (B // 8) * 8), N)    # sublane-aligned 2-D output blocks

    n_blocks = pl.cdiv(N, B)                # last block may be ragged (masked)

    fused, beta2 = pl.pallas_call(
        _attention_kernel,
        out_shape=(
            jax.ShapeDtypeStruct((N, D), z.dtype),
            jax.ShapeDtypeStruct((N, M), z.dtype),
        ),
        grid_spec=pltpu.PrefetchScalarGridSpec(
            num_scalar_prefetch=0,
            grid=(n_blocks,),
            in_specs=[
                pl.BlockSpec((B, M, D), lambda i: (i, 0, 0)),   # z row tile
                pl.BlockSpec((1, D), lambda i: (0, 0)),         # shared weight
            ],
            out_specs=[
                pl.BlockSpec((B, D), lambda i: (i, 0)),         # fused slab
                pl.BlockSpec((B, M), lambda i: (i, 0)),         # beta slab
            ],
        ),
        compiler_params=pltpu.CompilerParams(
            dimension_semantics=("parallel",),
            vmem_limit_bytes=vmem_limit_bytes,
        ),
    )(z, proj_weight)

    return fused, beta2[:, :, None]         # beta as (N, M, 1) for API parity


def _reference(z, proj_weight):
    # Pure-JAX reference mirroring the PyTorch forward.
    w = jnp.einsum("nmd,od->nmo", z, proj_weight)   # (N, M, 1)
    beta = jax.nn.softmax(w, axis=1)
    return (beta * z).sum(axis=1), beta


if __name__ == "__main__":
    key = jax.random.PRNGKey(0)
    k_z, k_w = jax.random.split(key)

    # Small shapes matching the module: batch N=2, views M=8, in_size D=32.
    N, M, D = 2, 8, 32
    z = jax.random.normal(k_z, (N, M, D), dtype=jnp.float32)
    # nn.Linear(in_size, 1, bias=False).weight has shape (1, in_size)
    proj_weight = jax.random.normal(k_w, (1, D), dtype=jnp.float32) * 0.1

    fused, beta = attention_forward(z, proj_weight)
    jax.block_until_ready((fused, beta))

    ref_fused, ref_beta = _reference(z, proj_weight)
    assert fused.shape == (N, D)
    assert beta.shape == (N, M, 1)
    assert jnp.allclose(fused, ref_fused, atol=1e-5, rtol=1e-5)
    assert jnp.allclose(beta, ref_beta, atol=1e-5, rtol=1e-5)

    # Ragged-tail case: force a multi-block grid (B=8, N=20) so the last block
    # reads past the end (Pallas pads the read) and its extra writes are
    # masked -- exercises the no-wrapper-padding path.
    N2, M2, D2 = 20, 8, 128
    k_z2, k_w2 = jax.random.split(jax.random.PRNGKey(0), 2)
    z2 = jax.random.normal(k_z2, (N2, M2, D2), dtype=jnp.float32)
    w2 = jax.random.normal(k_w2, (1, D2), dtype=jnp.float32) * 0.1
    fused2, beta_r = attention_forward(z2, w2, target_tile_bytes=8 * M2 * D2 * 4)
    jax.block_until_ready((fused2, beta_r))
    ref_fused2, ref_beta2 = _reference(z2, w2)
    assert jnp.allclose(fused2, ref_fused2, atol=1e-5, rtol=1e-5)
    assert jnp.allclose(beta_r, ref_beta2, atol=1e-5, rtol=1e-5)

    print("KERNEL_OK")
</pallas_src>

<mosaic_0001>
module attributes {stable_mosaic.version = 11 : i64} {
  func.func @_attention_kernel(%arg0: i32, %arg1: memref<2x8x32xf32, #tpu.memory_space<vmem>>, %arg2: memref<1x32xf32, #tpu.memory_space<vmem>>, %arg3: memref<2x32xf32, #tpu.memory_space<vmem>>, %arg4: memref<2x8xf32, #tpu.memory_space<vmem>>) attributes {dimension_semantics = [#tpu.dimension_semantics<parallel>], iteration_bounds = array<i64: 1>, scalar_prefetch = 0 : i64, scratch_operands = 0 : i64, tpu.core_type = #tpu.core_type<tc>, window_params = [{transform_indices = @transform_0, window_bounds = array<i64: 2, 8, 32>}, {pipeline_mode = #tpu.pipeline_mode<synchronous>, transform_indices = @transform_1, window_bounds = array<i64: 1, 32>}, {transform_indices = @transform_2, window_bounds = array<i64: 2, 32>}, {transform_indices = @transform_3, window_bounds = array<i64: 2, 8>}]} {
    %c0 = arith.constant 0 : index
    %c0_0 = arith.constant 0 : index
    %c0_1 = arith.constant 0 : index
    %0 = vector.load %arg1[%c0, %c0_0, %c0_1] : memref<2x8x32xf32, #tpu.memory_space<vmem>>, vector<2x8x32xf32>
    %c0_2 = arith.constant 0 : index
    %c0_3 = arith.constant 0 : index
    %1 = vector.load %arg2[%c0_2, %c0_3] : memref<1x32xf32, #tpu.memory_space<vmem>>, vector<1x32xf32>
    %2 = vector.shape_cast %1 : vector<1x32xf32> to vector<1x1x32xf32>
    %3 = vector.broadcast %2 : vector<1x1x32xf32> to vector<2x8x32xf32>
    %4 = arith.mulf %0, %3 : vector<2x8x32xf32>
    %cst = arith.constant dense<0.000000e+00> : vector<2x8xf32>
    %5 = vector.multi_reduction <add>, %4, %cst [2] : vector<2x8x32xf32> to vector<2x8xf32>
    %cst_4 = arith.constant dense<0xFF800000> : vector<2xf32>
    %6 = vector.multi_reduction <maximumf>, %5, %cst_4 [1] : vector<2x8xf32> to vector<2xf32>
    %7 = vector.shape_cast %6 : vector<2xf32> to vector<2x1xf32>
    %8 = vector.broadcast %7 : vector<2x1xf32> to vector<2x8xf32>
    %9 = arith.subf %5, %8 : vector<2x8xf32>
    %10 = math.exp %9 : vector<2x8xf32>
    %cst_5 = arith.constant dense<0.000000e+00> : vector<2xf32>
    %11 = vector.multi_reduction <add>, %10, %cst_5 [1] : vector<2x8xf32> to vector<2xf32>
    %12 = vector.shape_cast %11 : vector<2xf32> to vector<2x1xf32>
    %13 = tpu.reciprocal %12 : vector<2x1xf32> -> vector<2x1xf32>
    %14 = vector.shape_cast %10 : vector<2x8xf32> to vector<2x8x1xf32>
    %15 = vector.broadcast %14 : vector<2x8x1xf32> to vector<2x8x32xf32>
    %16 = arith.mulf %15, %0 : vector<2x8x32xf32>
    %cst_6 = arith.constant dense<0.000000e+00> : vector<2x32xf32>
    %17 = vector.multi_reduction <add>, %16, %cst_6 [1] : vector<2x8x32xf32> to vector<2x32xf32>
    %18 = vector.broadcast %13 : vector<2x1xf32> to vector<2x32xf32>
    %19 = arith.mulf %17, %18 : vector<2x32xf32>
    %c0_7 = arith.constant 0 : index
    %c0_8 = arith.constant 0 : index
    %20 = vector.load %arg3[%c0_7, %c0_8] : memref<2x32xf32, #tpu.memory_space<vmem>>, vector<2x32xf32>
    tpu.vector_store %arg3[%c0_7, %c0_8], %19 {strides = array<i32>} : memref<2x32xf32, #tpu.memory_space<vmem>>, vector<2x32xf32>,
    %21 = vector.broadcast %13 : vector<2x1xf32> to vector<2x8xf32>
    %22 = arith.mulf %10, %21 : vector<2x8xf32>
    %c0_9 = arith.constant 0 : index
    %c0_10 = arith.constant 0 : index
    %23 = vector.load %arg4[%c0_9, %c0_10] : memref<2x8xf32, #tpu.memory_space<vmem>>, vector<2x8xf32>
    tpu.vector_store %arg4[%c0_9, %c0_10], %22 {strides = array<i32>} : memref<2x8xf32, #tpu.memory_space<vmem>>, vector<2x8xf32>,
    return
  }
  func.func @transform_0(%arg0: i32) -> (i32, i32, i32) {
    %c0_i32 = arith.constant 0 : i32
    %c0_i32_0 = arith.constant 0 : i32
    %c0_i32_1 = arith.constant 0 : i32
    return %arg0, %c0_i32, %c0_i32_0 : i32, i32, i32
  }
  func.func @transform_1(%arg0: i32) -> (i32, i32) {
    %c0_i32 = arith.constant 0 : i32
    %c0_i32_0 = arith.constant 0 : i32
    %c0_i32_1 = arith.constant 0 : i32
    return %c0_i32, %c0_i32_0 : i32, i32
  }
  func.func @transform_2(%arg0: i32) -> (i32, i32) {
    %c0_i32 = arith.constant 0 : i32
    %c0_i32_0 = arith.constant 0 : i32
    return %arg0, %c0_i32 : i32, i32
  }
  func.func @transform_3(%arg0: i32) -> (i32, i32) {
    %c0_i32 = arith.constant 0 : i32
    %c0_i32_0 = arith.constant 0 : i32
    return %arg0, %c0_i32 : i32, i32
  }
}

</mosaic_0001>

<llo_original>
// kernel: tpu_custom_call.1
$region0: #{tpu_custom_call.1}
  #allocation0 [shape = 'u32[]', space=smem, size = 0x4, offset = 0x4, fixed_abs, tag = 'smem constant byte address 0x4 - core index']
  #allocation1 [shape = 'u32[144,128]{1,0:T(1,128)}', space=vmem, size = 0x12000, scoped, tag = 'internal scratch']
  %s0 = inlined_call_operand.hbm [shape: f32[2,8,32], index: 0, kind: input, shape index: {}]
  %s1 = inlined_call_operand.vmem [shape: f32[1,32], index: 1, kind: input, shape index: {}]
  %s2 = inlined_call_operand.hbm [shape: f32[2,32], index: 2, kind: output, shape index: {0}]
  %s3 = inlined_call_operand.hbm [shape: f32[2,8], index: 3, kind: output, shape index: {1}]
  %4 = xla_tuple %s2, %s3
  %s5 = sld [smem:[#allocation0]]
  $region30: #{tpu_custom_call.1} parent=0
    _
  %s7 = ssub.s32 1, %s5
  %s8 = scalar_select 0, %s7, %s5
  $region1: #{tpu_custom_call.1} parent=0
    #allocation2 [shape = 'u8[8192]{0}', space=vmem, size = 0x2000, scoped, tag = 'input window, operand 0, single buffered']
    #allocation3 [shape = 's32[1]{0}', space=sflag, size = 0x4, scoped, tag = 'scoped memory for tpu_custom_call.1']
    #allocation4 [shape = 's32[1]{0}', space=sflag, size = 0x4, scoped, tag = 'scoped memory for tpu_custom_call.1']
    #allocation5 [shape = 'u8[1024]{0}', space=vmem, size = 0x400, scoped, tag = 'output window, operand 0, single buffered']
    #allocation6 [shape = 'u8[1024]{0}', space=vmem, size = 0x400, scoped, tag = 'output window, operand 1, single buffered']
    #allocation7 [shape = 's32[1]{0}', space=sflag, size = 0x4, scoped, tag = 'scoped memory for tpu_custom_call.1']
    %9 = vsyncpa [#allocation3], 0
    %10 = vsyncpa [#allocation4], 0
    %11 = vsyncpa [#allocation7], 0
    // Predicated region
    $region2: #{tpu_custom_call.1} parent=1 // pred_check
      _
    $region3: #{tpu_custom_call.1} parent=1 // pred_check_branch
      %13 = sbr.rel (0) target = $region5
    $region4: #{tpu_custom_call.1} parent=1 // pred_region
      %s15 = ssub.s32 256, 256
      %16 = vsyncadd [#allocation3], %s15
      %s17 = sshll.u32 [#allocation2], 4
      %s18 = int_to_ptr.vmem [resolvable:$true] %s17
      %23 = dma.hbm_to_vmem [thread:$0]  %s0, 256, %s18, [#allocation3], 128, 128, 8
    $region5: #{tpu_custom_call.1} parent=1 // pred_fallthru
      _
    // Predicated region
    $region6: #{tpu_custom_call.1} parent=1 // pred_check
      _
    $region7: #{tpu_custom_call.1} parent=1 // pred_check_branch
      %25 = sbr.rel (0) target = $region9
    $region8: #{tpu_custom_call.1} parent=1 // pred_region
      _
    $region9: #{tpu_custom_call.1} parent=1 // pred_fallthru
      _
    // Predicated region
    $region10: #{tpu_custom_call.1} parent=1 // pred_check
      _
    $region11: #{tpu_custom_call.1} parent=1 // pred_check_branch
      %27 = sbr.rel (0) target = $region13
    $region12: #{tpu_custom_call.1} parent=1 // pred_region
      %28 = dma.done [#allocation3], 256
    $region13: #{tpu_custom_call.1} parent=1 // pred_fallthru
      _
    %v29 = vld [vmem:[#allocation2] sm:$0xff]
    %v30 = vld [vmem:[#allocation2 + $0x8] sm:$0xff]
    %v31 = vld [vmem:[%s1] sm:$0x1]
    %v33 = vlaneseq
    %v34 = vshrl.u32 %v33, 7
    %v35 = vsub.s32 0, %v34
    %v36 = vrot.slane %v31, %v35
    %v38 = vmul.f32 %v29, %v36
    %v39 = vmul.f32 %v30, %v36
    %vm40 = vcmask 261120
    %v41 = vsel %vm40, %v38, 0.0
    %42 = vadd.xlane.f32.xlu0 %v41
    %v43 = vpop.xlane.xlu0 %42
    %v44 = vsel %vm40, %v39, 0.0
    %45 = vadd.xlane.f32.xlu0 %v44
    %v46 = vpop.xlane.xlu0 %45
    %v49 = vlaneseq
    %v50 = vand.u32 %v49, 127
    %v51 = vlaneseq
    %v52 = vshrl.u32 %v51, 7
    %v53 = vsub.s32 %v50, %v52
    %v54 = vrot.slane %v43, %v53
    %v55 = vlaneseq
    %v56 = vshrl.u32 %v55, 7
    %v57 = vsub.s32 %v50, %v56
    %v58 = vrot.slane %v46, %v57
    %vm59 = vcmask 1041409
    %v60 = vsel %vm59, %v58, %v54
    %vm62 = vcmask 58368
    %v63 = vsel %vm62, %v60, -inf
    %64 = vmax.xlane.f32.xlu0 %v63
    %v65 = vpop.xlane.xlu0 %64
    %v67 = vlaneseq
    %v68 = vshrl.u32 %v67, 7
    %v69 = vsub.s32 0, %v68
    %v70 = vrot.slane %v65, %v69
    %v71 = vlaneseq
    %v72 = vshrl.u32 %v71, 7
    %v73 = vsub.s32 1, %v72
    %v74 = vrot.slane %v65, %v73
    %v77 = vsub.f32 %v43, %v70
    %v78 = vsub.f32 %v46, %v74
    %v79 = vmul.f32 %v77, 1.442695
    %v80 = vpow.pop %v79
    %v81 = vmul.f32 %v78, 1.442695
    %v82 = vpow.pop %v81
    %85 = vset.pattern.permute.xlu0 0
    %86 = vperm.xlu0 %85, %v80
    %v87 = vpop.permute.xlu0 %86
    %88 = vset.pattern.permute.xlu0 0
    %89 = vperm.xlu0 %88, %v82
    %v90 = vpop.permute.xlu0 %89
    %v91 = vlaneseq
    %v92 = vshrl.u32 %v91, 7
    %v93 = vsub.s32 %v50, %v92
    %v94 = vrot.slane %v87, %v93
    %v95 = vlaneseq
    %v96 = vshrl.u32 %v95, 7
    %v97 = vsub.s32 %v50, %v96
    %v98 = vrot.slane %v90, %v97
    %v99 = vsel %vm59, %v98, %v94
    %v101 = vsel %vm62, %v99, 0.0
    %102 = vadd.xlane.f32.xlu0 %v101
    %v103 = vpop.xlane.xlu0 %102
    %v104 = vrcp.pop %v103
    %v107 = vmul.f32 %v87, %v29
    %v108 = vmul.f32 %v90, %v30
    %v109 = vsel %vm40, %v107, 0.0
    %v110 = vrot.slane %v109, 4
    %v111 = vadd.f32 %v109, %v110
    %v112 = vrot.slane %v111, 2
    %v113 = vadd.f32 %v111, %v112
    %v114 = vrot.slane %v113, 1
    %v115 = vadd.f32 %v113, %v114
    %v116 = vsel %vm40, %v108, 0.0
    %v117 = vrot.slane %v116, 4
    %v118 = vadd.f32 %v116, %v117
    %v119 = vrot.slane %v118, 2
    %v120 = vadd.f32 %v118, %v119
    %v121 = vrot.slane %v120, 1
    %v122 = vadd.f32 %v120, %v121
    %v124 = vrot.slane %v104, 1
    %v127 = vmul.f32 %v115, %v104
    %v128 = vmul.f32 %v122, %v124
    %v131 = vrot.slane %v128, 7
    %v132 = vsel %vm59, %v131, %v127
    %vm134 = vcmask 254976
    %135 = vst.msk [vmem:[#allocation5] sm:$0x3] %vm134, %v132
    %v136 = vlaneseq
    %v137 = vshrl.u32 %v136, 7
    %v138 = vsub.s32 0, %v137
    %v139 = vrot.slane %v104, %v138
    %v140 = vlaneseq
    %v141 = vshrl.u32 %v140, 7
    %v142 = vsub.s32 1, %v141
    %v143 = vrot.slane %v104, %v142
    %v146 = vmul.f32 %v80, %v139
    %v147 = vmul.f32 %v82, %v143
    %150 = vset.pattern.permute.xlu0 0
    %151 = vperm.xlu0 %150, %v146
    %v152 = vpop.permute.xlu0 %151
    %153 = vset.pattern.permute.xlu0 0
    %154 = vperm.xlu0 %153, %v147
    %v155 = vpop.permute.xlu0 %154
    %v156 = vlaneseq
    %v157 = vshrl.u32 %v156, 7
    %v158 = vsub.s32 %v50, %v157
    %v159 = vrot.slane %v152, %v158
    %v160 = vlaneseq
    %v161 = vshrl.u32 %v160, 7
    %v162 = vsub.s32 %v50, %v161
    %v163 = vrot.slane %v155, %v162
    %v164 = vsel %vm59, %v163, %v159
    %166 = vst.msk [vmem:[#allocation6] sm:$0x3] %vm62, %v164
    // Predicated region
    $region14: #{tpu_custom_call.1} parent=1 // pred_check
      _
    $region15: #{tpu_custom_call.1} parent=1 // pred_check_branch
      %168 = sbr.rel (0) target = $region17
    $region16: #{tpu_custom_call.1} parent=1 // pred_region
      %s170 = ssub.s32 32, 32
      %171 = vsyncadd [#allocation4], %s170
      %s173 = sshll.u32 [#allocation5], 4
      %s174 = int_to_ptr.vmem [resolvable:$true] %s173
      %176 = dma.vmem_to_hbm [thread:$0]  %s174, 32, %s2, [#allocation4]
    $region17: #{tpu_custom_call.1} parent=1 // pred_fallthru
      _
    // Predicated region
    $region18: #{tpu_custom_call.1} parent=1 // pred_check
      _
    $region19: #{tpu_custom_call.1} parent=1 // pred_check_branch
      %178 = sbr.rel (0) target = $region21
    $region20: #{tpu_custom_call.1} parent=1 // pred_region
      %s180 = ssub.s32 32, 32
      %181 = vsyncadd [#allocation7], %s180
      %s183 = sshll.u32 [#allocation6], 4
      %s184 = int_to_ptr.vmem [resolvable:$true] %s183
      %186 = dma.vmem_to_hbm [thread:$0]  %s184, 32, %s3, [#allocation7]
    $region21: #{tpu_custom_call.1} parent=1 // pred_fallthru
      _
    // Predicated region
    $region22: #{tpu_custom_call.1} parent=1 // pred_check
      _
    $region23: #{tpu_custom_call.1} parent=1 // pred_check_branch
      %188 = sbr.rel (0) target = $region25
    $region24: #{tpu_custom_call.1} parent=1 // pred_region
      %189 = dma.done [#allocation4], 32
    $region25: #{tpu_custom_call.1} parent=1 // pred_fallthru
      _
    // Predicated region
    $region26: #{tpu_custom_call.1} parent=1 // pred_check
      _
    $region27: #{tpu_custom_call.1} parent=1 // pred_check_branch
      %191 = sbr.rel (0) target = $region29
    $region28: #{tpu_custom_call.1} parent=1 // pred_region
      %192 = dma.done [#allocation7], 32
    $region29: #{tpu_custom_call.1} parent=1 // pred_fallthru
      _
    %193 = vsyncpa [#allocation3], 1
    %194 = vsyncpa [#allocation4], 1
    %195 = vsyncpa [#allocation7], 1

</llo_original>
